<compile_context>
chip_gen: v5e
topology: v5e:2x2
jax: 0.10.0
libtpu: 0.0.40
codegen_flags: <defaults>
</compile_context>

<pallas_src>
import jax
import jax.numpy as jnp
from jax.experimental import pallas as pl
from jax.experimental.pallas import tpu as pltpu

N_LAYERS = 6
IN_DIM = 8     # input features
HID = 20       # hidden width
PAD = 20       # packed square size for weights
LANE = 128


def mlp_kernel(x_ref, w_ref, b_ref, o_ref):
    """Feature-major MLP forward on one batch tile.

    x_ref: (8, TB)     input tile (batch on lanes)
    w_ref: (6, 20, 20) packed weights, PyTorch (out, in) layout, zero-padded
    b_ref: (20, 8)     packed biases, column j = bias of layer j (zero-padded)
    o_ref: (1, TB)     output tile
    """
    w = w_ref[...]                      # (6, 20, 20), resident in VMEM
    b = b_ref[...]                      # (20, 8)
    z = x_ref[...]                      # (8, TB) float32

    # Layer 1: (20, 8) @ (8, TB) + b1, ReLU
    z = jnp.maximum(
        jnp.dot(w[0, :, :IN_DIM], z, preferred_element_type=jnp.float32)
        + b[:, 0:1], 0.0)

    # Layers 2..5: (20, 20) @ (20, TB) + b, ReLU   (static unrolled loop)
    for i in range(1, 5):
        z = jnp.maximum(
            jnp.dot(w[i], z, preferred_element_type=jnp.float32)
            + b[:, i:i + 1], 0.0)

    # Output layer: W6 is zero-padded to (20, 20); only row 0 is real.
    y = jnp.dot(w[5], z, preferred_element_type=jnp.float32) + b[:, 5:6]
    o_ref[...] = y[0:1, :].astype(o_ref.dtype)      # (1, TB) lane-dense store


def pack_params(params):
    """Pack 6 (W(out,in), b(out,)) PyTorch-layout pairs into two slabs."""
    w_pack = jnp.zeros((N_LAYERS, PAD, PAD), jnp.float32)
    b_pack = jnp.zeros((PAD, 8), jnp.float32)
    for i, (w, b) in enumerate(params):
        o, n = w.shape
        w_pack = w_pack.at[i, :o, :n].set(w.astype(jnp.float32))
        b_pack = b_pack.at[:o, i].set(b.astype(jnp.float32).reshape(o))
    return w_pack, b_pack


def networks_forward(x, params, *, max_tile=1024):
    """x: (B, 8) float32; params: list of 6 (W(out,in), b(out,)) pairs.

    Returns (B, 1) float32, matching the PyTorch module.
    max_tile: batch tile cap (multiple of 128). 1024 rows f32 is tiny vs VMEM
    on all generations; halve it further only if co-resident kernels squeeze
    v7x's 64 MiB VMEM.
    """
    B = x.shape[0]
    w_pack, b_pack = pack_params(params)

    # Feature-major input: (8, B) so the batch sits on the lane axis.
    x_fm = jnp.transpose(x.astype(jnp.float32))            # (8, B)

    # Batch tile: multiple of 128 lanes, capped; pad B up to a grid multiple
    # so the tail tile never goes out of range (padded cols are sliced off).
    b_lanes = max(LANE, ((B + LANE - 1) // LANE) * LANE)
    tb = min(max_tile, b_lanes)
    nb = pl.cdiv(B, tb)
    b_pad = nb * tb
    if b_pad != B:
        x_fm = jnp.pad(x_fm, ((0, 0), (0, b_pad - B)))

    out = pl.pallas_call(
        mlp_kernel,
        out_shape=jax.ShapeDtypeStruct((1, b_pad), jnp.float32),
        grid=(nb,),
        in_specs=[
            # x tile: pipelined / double-buffered across the batch grid.
            pl.BlockSpec((IN_DIM, tb), lambda i: (0, i)),
            # packed weights + biases: constant index_map -> VMEM-resident.
            pl.BlockSpec(w_pack.shape, lambda i: (0, 0, 0)),
            pl.BlockSpec(b_pack.shape, lambda i: (0, 0)),
        ],
        out_specs=pl.BlockSpec((1, tb), lambda i: (0, i)),
        compiler_params=pltpu.CompilerParams(
            dimension_semantics=("parallel",),      # shards batch across TCs on v7x
            vmem_limit_bytes=32 * 1024 * 1024,      # well within v7x's 64 MiB
        ),
    )(x_fm, w_pack, b_pack)

    return out[0, :B][:, None]                      # (B, 1)


def init_params(key):
    """Deterministic init mirroring the PyTorch module (weights (out,in), bias (out,))."""
    dims = [(8, 20), (20, 20), (20, 20), (20, 20), (20, 20), (20, 1)]
    params = []
    for (fan_in, fan_out) in dims:
        key, kw, kb = jax.random.split(key, 3)
        bound = 1.0 / (fan_in ** 0.5)               # PyTorch default Linear init range
        w = jax.random.uniform(kw, (fan_out, fan_in), jnp.float32,
                               minval=-bound, maxval=bound)
        b = jax.random.uniform(kb, (fan_out,), jnp.float32,
                               minval=-bound, maxval=bound)
        params.append((w, b))
    return params


def reference_forward(x, params):
    """Pure-JAX reference matching the PyTorch forward."""
    z = x
    for i, (w, b) in enumerate(params):
        z = z @ w.T + b
        if i < len(params) - 1:
            z = jnp.maximum(z, 0.0)
    return z


if __name__ == "__main__":
    key = jax.random.PRNGKey(0)
    key, kx = jax.random.split(key)
    B = 8
    x = jax.random.normal(kx, (B, IN_DIM), jnp.float32)

    params = init_params(key)

    out = networks_forward(x, params)
    out = jax.block_until_ready(out)

    ref = reference_forward(x, params)
    assert out.shape == (B, 1), out.shape
    assert jnp.allclose(out, ref, atol=1e-4, rtol=1e-4), (out, ref)

    print("KERNEL_OK")
</pallas_src>

<mosaic_0001>
module attributes {stable_mosaic.version = 11 : i64} {
  func.func @mlp_kernel(%arg0: i32, %arg1: memref<8x128xf32, #tpu.memory_space<vmem>>, %arg2: memref<6x20x20xf32, #tpu.memory_space<vmem>>, %arg3: memref<20x8xf32, #tpu.memory_space<vmem>>, %arg4: memref<1x128xf32, #tpu.memory_space<vmem>>) attributes {dimension_semantics = [#tpu.dimension_semantics<parallel>], iteration_bounds = array<i64: 1>, scalar_prefetch = 0 : i64, scratch_operands = 0 : i64, tpu.core_type = #tpu.core_type<tc>, window_params = [{transform_indices = @transform_0, window_bounds = array<i64: 8, 128>}, {pipeline_mode = #tpu.pipeline_mode<synchronous>, transform_indices = @transform_1, window_bounds = array<i64: 6, 20, 20>}, {pipeline_mode = #tpu.pipeline_mode<synchronous>, transform_indices = @transform_2, window_bounds = array<i64: 20, 8>}, {transform_indices = @transform_3, window_bounds = array<i64: 1, 128>}]} {
    %c0 = arith.constant 0 : index
    %c0_0 = arith.constant 0 : index
    %c0_1 = arith.constant 0 : index
    %0 = vector.load %arg2[%c0, %c0_0, %c0_1] : memref<6x20x20xf32, #tpu.memory_space<vmem>>, vector<6x20x20xf32>
    %c0_2 = arith.constant 0 : index
    %c0_3 = arith.constant 0 : index
    %1 = vector.load %arg3[%c0_2, %c0_3] : memref<20x8xf32, #tpu.memory_space<vmem>>, vector<20x8xf32>
    %c0_4 = arith.constant 0 : index
    %c0_5 = arith.constant 0 : index
    %2 = vector.load %arg1[%c0_4, %c0_5] : memref<8x128xf32, #tpu.memory_space<vmem>>, vector<8x128xf32>
    %3 = vector.extract_strided_slice %0 {offsets = [0, 0, 0], sizes = [1, 20, 8], strides = [1, 1, 1]} : vector<6x20x20xf32> to vector<1x20x8xf32>
    %4 = vector.shape_cast %3 : vector<1x20x8xf32> to vector<20x8xf32>
    %cst = arith.constant dense<0.000000e+00> : vector<20x128xf32>
    %5 = tpu.matmul %4, %2, %cst {dimension_numbers = #tpu.dot_dimension_numbers<[1], [0], [0], [1], [0, 0, 1, 1], [], []>} : vector<20x8xf32>, vector<8x128xf32>, vector<20x128xf32> -> vector<20x128xf32>
    %6 = vector.extract_strided_slice %1 {offsets = [0, 0], sizes = [20, 1], strides = [1, 1]} : vector<20x8xf32> to vector<20x1xf32>
    %7 = vector.broadcast %6 : vector<20x1xf32> to vector<20x128xf32>
    %8 = arith.addf %5, %7 : vector<20x128xf32>
    %cst_6 = arith.constant 0.000000e+00 : f32
    %9 = vector.broadcast %cst_6 : f32 to vector<20x128xf32>
    %10 = arith.maximumf %8, %9 : vector<20x128xf32>
    %11 = vector.extract_strided_slice %0 {offsets = [1, 0, 0], sizes = [1, 20, 20], strides = [1, 1, 1]} : vector<6x20x20xf32> to vector<1x20x20xf32>
    %12 = vector.shape_cast %11 : vector<1x20x20xf32> to vector<20x20xf32>
    %cst_7 = arith.constant dense<0.000000e+00> : vector<20x128xf32>
    %13 = tpu.matmul %12, %10, %cst_7 {dimension_numbers = #tpu.dot_dimension_numbers<[1], [0], [0], [1], [0, 0, 1, 1], [], []>} : vector<20x20xf32>, vector<20x128xf32>, vector<20x128xf32> -> vector<20x128xf32>
    %14 = vector.extract_strided_slice %1 {offsets = [0, 1], sizes = [20, 1], strides = [1, 1]} : vector<20x8xf32> to vector<20x1xf32>
    %15 = vector.broadcast %14 : vector<20x1xf32> to vector<20x128xf32>
    %16 = arith.addf %13, %15 : vector<20x128xf32>
    %cst_8 = arith.constant 0.000000e+00 : f32
    %17 = vector.broadcast %cst_8 : f32 to vector<20x128xf32>
    %18 = arith.maximumf %16, %17 : vector<20x128xf32>
    %19 = vector.extract_strided_slice %0 {offsets = [2, 0, 0], sizes = [1, 20, 20], strides = [1, 1, 1]} : vector<6x20x20xf32> to vector<1x20x20xf32>
    %20 = vector.shape_cast %19 : vector<1x20x20xf32> to vector<20x20xf32>
    %cst_9 = arith.constant dense<0.000000e+00> : vector<20x128xf32>
    %21 = tpu.matmul %20, %18, %cst_9 {dimension_numbers = #tpu.dot_dimension_numbers<[1], [0], [0], [1], [0, 0, 1, 1], [], []>} : vector<20x20xf32>, vector<20x128xf32>, vector<20x128xf32> -> vector<20x128xf32>
    %22 = vector.extract_strided_slice %1 {offsets = [0, 2], sizes = [20, 1], strides = [1, 1]} : vector<20x8xf32> to vector<20x1xf32>
    %23 = vector.broadcast %22 : vector<20x1xf32> to vector<20x128xf32>
    %24 = arith.addf %21, %23 : vector<20x128xf32>
    %cst_10 = arith.constant 0.000000e+00 : f32
    %25 = vector.broadcast %cst_10 : f32 to vector<20x128xf32>
    %26 = arith.maximumf %24, %25 : vector<20x128xf32>
    %27 = vector.extract_strided_slice %0 {offsets = [3, 0, 0], sizes = [1, 20, 20], strides = [1, 1, 1]} : vector<6x20x20xf32> to vector<1x20x20xf32>
    %28 = vector.shape_cast %27 : vector<1x20x20xf32> to vector<20x20xf32>
    %cst_11 = arith.constant dense<0.000000e+00> : vector<20x128xf32>
    %29 = tpu.matmul %28, %26, %cst_11 {dimension_numbers = #tpu.dot_dimension_numbers<[1], [0], [0], [1], [0, 0, 1, 1], [], []>} : vector<20x20xf32>, vector<20x128xf32>, vector<20x128xf32> -> vector<20x128xf32>
    %30 = vector.extract_strided_slice %1 {offsets = [0, 3], sizes = [20, 1], strides = [1, 1]} : vector<20x8xf32> to vector<20x1xf32>
    %31 = vector.broadcast %30 : vector<20x1xf32> to vector<20x128xf32>
    %32 = arith.addf %29, %31 : vector<20x128xf32>
    %cst_12 = arith.constant 0.000000e+00 : f32
    %33 = vector.broadcast %cst_12 : f32 to vector<20x128xf32>
    %34 = arith.maximumf %32, %33 : vector<20x128xf32>
    %35 = vector.extract_strided_slice %0 {offsets = [4, 0, 0], sizes = [1, 20, 20], strides = [1, 1, 1]} : vector<6x20x20xf32> to vector<1x20x20xf32>
    %36 = vector.shape_cast %35 : vector<1x20x20xf32> to vector<20x20xf32>
    %cst_13 = arith.constant dense<0.000000e+00> : vector<20x128xf32>
    %37 = tpu.matmul %36, %34, %cst_13 {dimension_numbers = #tpu.dot_dimension_numbers<[1], [0], [0], [1], [0, 0, 1, 1], [], []>} : vector<20x20xf32>, vector<20x128xf32>, vector<20x128xf32> -> vector<20x128xf32>
    %38 = vector.extract_strided_slice %1 {offsets = [0, 4], sizes = [20, 1], strides = [1, 1]} : vector<20x8xf32> to vector<20x1xf32>
    %39 = vector.broadcast %38 : vector<20x1xf32> to vector<20x128xf32>
    %40 = arith.addf %37, %39 : vector<20x128xf32>
    %cst_14 = arith.constant 0.000000e+00 : f32
    %41 = vector.broadcast %cst_14 : f32 to vector<20x128xf32>
    %42 = arith.maximumf %40, %41 : vector<20x128xf32>
    %43 = vector.extract_strided_slice %0 {offsets = [5, 0, 0], sizes = [1, 20, 20], strides = [1, 1, 1]} : vector<6x20x20xf32> to vector<1x20x20xf32>
    %44 = vector.shape_cast %43 : vector<1x20x20xf32> to vector<20x20xf32>
    %cst_15 = arith.constant dense<0.000000e+00> : vector<20x128xf32>
    %45 = tpu.matmul %44, %42, %cst_15 {dimension_numbers = #tpu.dot_dimension_numbers<[1], [0], [0], [1], [0, 0, 1, 1], [], []>} : vector<20x20xf32>, vector<20x128xf32>, vector<20x128xf32> -> vector<20x128xf32>
    %46 = vector.extract_strided_slice %1 {offsets = [0, 5], sizes = [20, 1], strides = [1, 1]} : vector<20x8xf32> to vector<20x1xf32>
    %47 = vector.broadcast %46 : vector<20x1xf32> to vector<20x128xf32>
    %48 = arith.addf %45, %47 : vector<20x128xf32>
    %49 = vector.extract_strided_slice %48 {offsets = [0, 0], sizes = [1, 128], strides = [1, 1]} : vector<20x128xf32> to vector<1x128xf32>
    %c0_16 = arith.constant 0 : index
    %c0_17 = arith.constant 0 : index
    %50 = vector.load %arg4[%c0_16, %c0_17] : memref<1x128xf32, #tpu.memory_space<vmem>>, vector<1x128xf32>
    tpu.vector_store %arg4[%c0_16, %c0_17], %49 {strides = array<i32>} : memref<1x128xf32, #tpu.memory_space<vmem>>, vector<1x128xf32>,
    return
  }
  func.func @transform_0(%arg0: i32) -> (i32, i32) {
    %c0_i32 = arith.constant 0 : i32
    %c0_i32_0 = arith.constant 0 : i32
    return %c0_i32, %arg0 : i32, i32
  }
  func.func @transform_1(%arg0: i32) -> (i32, i32, i32) {
    %c0_i32 = arith.constant 0 : i32
    %c0_i32_0 = arith.constant 0 : i32
    %c0_i32_1 = arith.constant 0 : i32
    %c0_i32_2 = arith.constant 0 : i32
    return %c0_i32, %c0_i32_0, %c0_i32_1 : i32, i32, i32
  }
  func.func @transform_2(%arg0: i32) -> (i32, i32) {
    %c0_i32 = arith.constant 0 : i32
    %c0_i32_0 = arith.constant 0 : i32
    %c0_i32_1 = arith.constant 0 : i32
    return %c0_i32, %c0_i32_0 : i32, i32
  }
  func.func @transform_3(%arg0: i32) -> (i32, i32) {
    %c0_i32 = arith.constant 0 : i32
    %c0_i32_0 = arith.constant 0 : i32
    return %c0_i32, %arg0 : i32, i32
  }
}

</mosaic_0001>

<llo_original>
// kernel: tpu_custom_call.1
$region0: #{tpu_custom_call.1}
  #allocation0 [shape = 'u32[]', space=smem, size = 0x4, offset = 0x4, fixed_abs, tag = 'smem constant byte address 0x4 - core index']
  #allocation1 [shape = 'u32[72,128]{1,0:T(1,128)}', space=vmem, size = 0x9000, scoped, tag = 'internal scratch']
  %s0 = inlined_call_operand.vmem [shape: f32[8,128], index: 0, kind: input, shape index: {}]
  %s1 = inlined_call_operand.hbm [shape: f32[6,20,20], index: 1, kind: input, shape index: {}]
  %s2 = inlined_call_operand.vmem [shape: f32[20,8], index: 2, kind: input, shape index: {}]
  %s3 = inlined_call_operand.hbm [shape: f32[1,128], index: 3, kind: output, shape index: {}]
  %s4 = sld [smem:[#allocation0]]
  $region26: #{tpu_custom_call.1} parent=0
    _
  %s6 = ssub.s32 1, %s4
  %s7 = scalar_select 0, %s6, %s4
  $region1: #{tpu_custom_call.1} parent=0
    #allocation2 [shape = 'u8[73728]{0}', space=vmem, size = 0x12000, scoped, tag = 'input window, operand 1, single buffered']
    #allocation3 [shape = 's32[1]{0}', space=sflag, size = 0x4, scoped, tag = 'scoped memory for tpu_custom_call.1']
    #allocation4 [shape = 's32[1]{0}', space=sflag, size = 0x4, scoped, tag = 'scoped memory for tpu_custom_call.1']
    #allocation5 [shape = 'u8[512]{0}', space=vmem, size = 0x400, scoped, tag = 'output window, operand 0, single buffered']
    %8 = vsyncpa [#allocation3], 0
    %9 = vsyncpa [#allocation4], 0
    // Predicated region
    $region2: #{tpu_custom_call.1} parent=1 // pred_check
      _
    $region3: #{tpu_custom_call.1} parent=1 // pred_check_branch
      %11 = sbr.rel (0) target = $region5
    $region4: #{tpu_custom_call.1} parent=1 // pred_region
      _
    $region5: #{tpu_custom_call.1} parent=1 // pred_fallthru
      _
    // Predicated region
    $region6: #{tpu_custom_call.1} parent=1 // pred_check
      _
    $region7: #{tpu_custom_call.1} parent=1 // pred_check_branch
      %13 = sbr.rel (0) target = $region9
    $region8: #{tpu_custom_call.1} parent=1 // pred_region
      %15 = vsyncadd [#allocation3], 0
      %s16 = sshll.u32 %s1, 4
      %s17 = int_to_ptr.hbm [resolvable:$true] %s16
      %s18 = sshll.u32 [#allocation2], 4
      %s19 = int_to_ptr.vmem [resolvable:$true] %s18
      %24 = dma.hbm_to_vmem [thread:$0]  %s17, 2304, %s19, [#allocation3], 128, 128, 8
    $region9: #{tpu_custom_call.1} parent=1 // pred_fallthru
      _
    // Predicated region
    $region10: #{tpu_custom_call.1} parent=1 // pred_check
      _
    $region11: #{tpu_custom_call.1} parent=1 // pred_check_branch
      %26 = sbr.rel (0) target = $region13
    $region12: #{tpu_custom_call.1} parent=1 // pred_region
      _
    $region13: #{tpu_custom_call.1} parent=1 // pred_fallthru
      _
    // Predicated region
    $region14: #{tpu_custom_call.1} parent=1 // pred_check
      _
    $region15: #{tpu_custom_call.1} parent=1 // pred_check_branch
      %28 = sbr.rel (0) target = $region17
    $region16: #{tpu_custom_call.1} parent=1 // pred_region
      %30 = dma.done [#allocation3], 2304
    $region17: #{tpu_custom_call.1} parent=1 // pred_fallthru
      _
    %v31 = vld [vmem:[#allocation2] sm:$0xff]
    %v32 = vld [vmem:[#allocation2 + $0x8] sm:$0xff]
    %v33 = vld [vmem:[#allocation2 + $0x10] sm:$0xf]
    %v34 = vld [vmem:[#allocation2 + $0x18] sm:$0xff]
    %v35 = vld [vmem:[#allocation2 + $0x20] sm:$0xff]
    %v36 = vld [vmem:[#allocation2 + $0x28] sm:$0xf]
    %v37 = vld [vmem:[#allocation2 + $0x30] sm:$0xff]
    %v38 = vld [vmem:[#allocation2 + $0x38] sm:$0xff]
    %v39 = vld [vmem:[#allocation2 + $0x40] sm:$0xf]
    %v40 = vld [vmem:[#allocation2 + $0x48] sm:$0xff]
    %v41 = vld [vmem:[#allocation2 + $0x50] sm:$0xff]
    %v42 = vld [vmem:[#allocation2 + $0x58] sm:$0xf]
    %v43 = vld [vmem:[#allocation2 + $0x60] sm:$0xff]
    %v44 = vld [vmem:[#allocation2 + $0x68] sm:$0xff]
    %v45 = vld [vmem:[#allocation2 + $0x70] sm:$0xf]
    %v46 = vld [vmem:[#allocation2 + $0x78] sm:$0xff]
    %v47 = vld [vmem:[#allocation2 + $0x80] sm:$0xff]
    %v48 = vld [vmem:[#allocation2 + $0x88] sm:$0xf]
    %v49 = vld [vmem:[%s2] sm:$0xff]
    %v50 = vld [vmem:[%s2 + $0x8] sm:$0xff]
    %v51 = vld [vmem:[%s2 + $0x10] sm:$0xf]
    %v52 = vld [vmem:[%s0] sm:$0xff]
    %54 = vset.pattern.permute.xlu0 0
    %55 = vperm.xlu0 %54, %v49
    %v56 = vpop.permute.xlu0 %55
    %59 = vset.pattern.permute.xlu0 0
    %60 = vperm.xlu0 %59, %v50
    %v61 = vpop.permute.xlu0 %60
    %64 = vset.pattern.permute.xlu0 0
    %65 = vperm.xlu0 %64, %v51
    %v66 = vpop.permute.xlu0 %65
    %vm68 = vcmask 64512
    %v70 = vsel %vm68, %v31, 0
    %v73 = vsel %vm68, %v32, 0
    %v76 = vsel %vm68, %v33, 0
    %78 = vmatpush.msra.mxu0 0.0
    %79 = vmatpush.msra.mxu0 0.0
    %80 = vmatpush.msra.mxu0 0.0
    %81 = vmatpush.msra.mxu0 0.0
    %82 = vmatpush.msra.mxu0 0.0
    %83 = vmatpush.msra.mxu0 0.0
    %84 = vmatpush.msra.mxu0 0.0
    %85 = vmatpush.msra.mxu0 0.0
    %86 = vmatpush.msra.mxu0 0.0
    %87 = vmatpush.msra.mxu0 0.0
    %88 = vmatpush.msra.mxu0 0.0
    %89 = vmatpush.msra.mxu0 0.0
    %90 = vmatpush.msra.mxu0 0.0
    %91 = vmatpush.msra.mxu0 0.0
    %92 = vmatpush.msra.mxu0 0.0
    %93 = vmatpush.msra.mxu0 %v52
    %94 = vmatmul.f32.gmra.mxu0 %v70
    %v95 = vpop.f32.mrf.mxu0
    %v96 = vadd.f32 %v56, %v95
    %97 = vmatmul.f32.gmra.mxu0 %v73
    %v98 = vpop.f32.mrf.mxu0
    %v99 = vadd.f32 %v61, %v98
    %100 = vmatmul.f32.gmra.mxu0 %v76
    %v101 = vpop.f32.mrf.mxu0
    %v102 = vadd.f32 %v66, %v101
    %103 = vdwg.mxu0
    %v104 = vmax.f32 %v96, 0.0
    %v105 = vmax.f32 %v99, 0.0
    %v106 = vmax.f32 %v102, 0.0
    %107 = vset.pattern.permute.xlu0 1
    %108 = vperm.xlu0 %107, %v49
    %v109 = vpop.permute.xlu0 %108
    %111 = vset.pattern.permute.xlu0 1
    %112 = vperm.xlu0 %111, %v50
    %v113 = vpop.permute.xlu0 %112
    %115 = vset.pattern.permute.xlu0 1
    %116 = vperm.xlu0 %115, %v51
    %v117 = vpop.permute.xlu0 %116
    %vm119 = vcmask 162816
    %v121 = vsel %vm119, %v34, 0
    %v124 = vsel %vm119, %v35, 0
    %v127 = vsel %vm119, %v36, 0
    %vm129 = vcmask 1043456
    %v131 = vsel %vm129, %v106, 0
    %133 = vmatpush.msra.mxu0 0.0
    %134 = vmatpush.msra.mxu0 0.0
    %135 = vmatpush.msra.mxu0 0.0
    %136 = vmatpush.msra.mxu0 0.0
    %137 = vmatpush.msra.mxu0 0.0
    %138 = vmatpush.msra.mxu0 0.0
    %139 = vmatpush.msra.mxu0 0.0
    %140 = vmatpush.msra.mxu0 0.0
    %141 = vmatpush.msra.mxu0 0.0
    %142 = vmatpush.msra.mxu0 0.0
    %143 = vmatpush.msra.mxu0 0.0
    %144 = vmatpush.msra.mxu0 0.0
    %145 = vmatpush.msra.mxu0 0.0
    %146 = vmatpush.msra.mxu0 %v131
    %147 = vmatpush.msra.mxu0 %v105
    %148 = vmatpush.msra.mxu0 %v104
    %149 = vmatmul.f32.gmra.mxu0 %v121
    %v150 = vpop.f32.mrf.mxu0
    %v151 = vadd.f32 %v109, %v150
    %152 = vmatmul.f32.gmra.mxu0 %v124
    %v153 = vpop.f32.mrf.mxu0
    %v154 = vadd.f32 %v113, %v153
    %155 = vmatmul.f32.gmra.mxu0 %v127
    %v156 = vpop.f32.mrf.mxu0
    %v157 = vadd.f32 %v117, %v156
    %158 = vdwg.mxu0
    %v159 = vmax.f32 %v151, 0.0
    %v160 = vmax.f32 %v154, 0.0
    %v161 = vmax.f32 %v157, 0.0
    %162 = vset.pattern.permute.xlu0 2
    %163 = vperm.xlu0 %162, %v49
    %v164 = vpop.permute.xlu0 %163
    %166 = vset.pattern.permute.xlu0 2
    %167 = vperm.xlu0 %166, %v50
    %v168 = vpop.permute.xlu0 %167
    %170 = vset.pattern.permute.xlu0 2
    %171 = vperm.xlu0 %170, %v51
    %v172 = vpop.permute.xlu0 %171
    %v175 = vsel %vm119, %v37, 0
    %v178 = vsel %vm119, %v38, 0
    %v181 = vsel %vm119, %v39, 0
    %v184 = vsel %vm129, %v161, 0
    %186 = vmatpush.msra.mxu0 0.0
    %187 = vmatpush.msra.mxu0 0.0
    %188 = vmatpush.msra.mxu0 0.0
    %189 = vmatpush.msra.mxu0 0.0
    %190 = vmatpush.msra.mxu0 0.0
    %191 = vmatpush.msra.mxu0 0.0
    %192 = vmatpush.msra.mxu0 0.0
    %193 = vmatpush.msra.mxu0 0.0
    %194 = vmatpush.msra.mxu0 0.0
    %195 = vmatpush.msra.mxu0 0.0
    %196 = vmatpush.msra.mxu0 0.0
    %197 = vmatpush.msra.mxu0 0.0
    %198 = vmatpush.msra.mxu0 0.0
    %199 = vmatpush.msra.mxu0 %v184
    %200 = vmatpush.msra.mxu0 %v160
    %201 = vmatpush.msra.mxu0 %v159
    %202 = vmatmul.f32.gmra.mxu0 %v175
    %v203 = vpop.f32.mrf.mxu0
    %v204 = vadd.f32 %v164, %v203
    %205 = vmatmul.f32.gmra.mxu0 %v178
    %v206 = vpop.f32.mrf.mxu0
    %v207 = vadd.f32 %v168, %v206
    %208 = vmatmul.f32.gmra.mxu0 %v181
    %v209 = vpop.f32.mrf.mxu0
    %v210 = vadd.f32 %v172, %v209
    %211 = vdwg.mxu0
    %v212 = vmax.f32 %v204, 0.0
    %v213 = vmax.f32 %v207, 0.0
    %v214 = vmax.f32 %v210, 0.0
    %215 = vset.pattern.permute.xlu0 3
    %216 = vperm.xlu0 %215, %v49
    %v217 = vpop.permute.xlu0 %216
    %219 = vset.pattern.permute.xlu0 3
    %220 = vperm.xlu0 %219, %v50
    %v221 = vpop.permute.xlu0 %220
    %223 = vset.pattern.permute.xlu0 3
    %224 = vperm.xlu0 %223, %v51
    %v225 = vpop.permute.xlu0 %224
    %v228 = vsel %vm119, %v40, 0
    %v231 = vsel %vm119, %v41, 0
    %v234 = vsel %vm119, %v42, 0
    %v237 = vsel %vm129, %v214, 0
    %239 = vmatpush.msra.mxu0 0.0
    %240 = vmatpush.msra.mxu0 0.0
    %241 = vmatpush.msra.mxu0 0.0
    %242 = vmatpush.msra.mxu0 0.0
    %243 = vmatpush.msra.mxu0 0.0
    %244 = vmatpush.msra.mxu0 0.0
    %245 = vmatpush.msra.mxu0 0.0
    %246 = vmatpush.msra.mxu0 0.0
    %247 = vmatpush.msra.mxu0 0.0
    %248 = vmatpush.msra.mxu0 0.0
    %249 = vmatpush.msra.mxu0 0.0
    %250 = vmatpush.msra.mxu0 0.0
    %251 = vmatpush.msra.mxu0 0.0
    %252 = vmatpush.msra.mxu0 %v237
    %253 = vmatpush.msra.mxu0 %v213
    %254 = vmatpush.msra.mxu0 %v212
    %255 = vmatmul.f32.gmra.mxu0 %v228
    %v256 = vpop.f32.mrf.mxu0
    %v257 = vadd.f32 %v217, %v256
    %258 = vmatmul.f32.gmra.mxu0 %v231
    %v259 = vpop.f32.mrf.mxu0
    %v260 = vadd.f32 %v221, %v259
    %261 = vmatmul.f32.gmra.mxu0 %v234
    %v262 = vpop.f32.mrf.mxu0
    %v263 = vadd.f32 %v225, %v262
    %264 = vdwg.mxu0
    %v265 = vmax.f32 %v257, 0.0
    %v266 = vmax.f32 %v260, 0.0
    %v267 = vmax.f32 %v263, 0.0
    %268 = vset.pattern.permute.xlu0 4
    %269 = vperm.xlu0 %268, %v49
    %v270 = vpop.permute.xlu0 %269
    %272 = vset.pattern.permute.xlu0 4
    %273 = vperm.xlu0 %272, %v50
    %v274 = vpop.permute.xlu0 %273
    %276 = vset.pattern.permute.xlu0 4
    %277 = vperm.xlu0 %276, %v51
    %v278 = vpop.permute.xlu0 %277
    %v281 = vsel %vm119, %v43, 0
    %v284 = vsel %vm119, %v44, 0
    %v287 = vsel %vm119, %v45, 0
    %v290 = vsel %vm129, %v267, 0
    %292 = vmatpush.msra.mxu0 0.0
    %293 = vmatpush.msra.mxu0 0.0
    %294 = vmatpush.msra.mxu0 0.0
    %295 = vmatpush.msra.mxu0 0.0
    %296 = vmatpush.msra.mxu0 0.0
    %297 = vmatpush.msra.mxu0 0.0
    %298 = vmatpush.msra.mxu0 0.0
    %299 = vmatpush.msra.mxu0 0.0
    %300 = vmatpush.msra.mxu0 0.0
    %301 = vmatpush.msra.mxu0 0.0
    %302 = vmatpush.msra.mxu0 0.0
    %303 = vmatpush.msra.mxu0 0.0
    %304 = vmatpush.msra.mxu0 0.0
    %305 = vmatpush.msra.mxu0 %v290
    %306 = vmatpush.msra.mxu0 %v266
    %307 = vmatpush.msra.mxu0 %v265
    %308 = vmatmul.f32.gmra.mxu0 %v281
    %v309 = vpop.f32.mrf.mxu0
    %v310 = vadd.f32 %v270, %v309
    %311 = vmatmul.f32.gmra.mxu0 %v284
    %v312 = vpop.f32.mrf.mxu0
    %v313 = vadd.f32 %v274, %v312
    %314 = vmatmul.f32.gmra.mxu0 %v287
    %v315 = vpop.f32.mrf.mxu0
    %v316 = vadd.f32 %v278, %v315
    %317 = vdwg.mxu0
    %v318 = vmax.f32 %v310, 0.0
    %v319 = vmax.f32 %v313, 0.0
    %v320 = vmax.f32 %v316, 0.0
    %321 = vset.pattern.permute.xlu0 5
    %322 = vperm.xlu0 %321, %v49
    %v323 = vpop.permute.xlu0 %322
    %325 = vset.pattern.permute.xlu0 5
    %326 = vperm.xlu0 %325, %v50
    %v327 = vpop.permute.xlu0 %326
    %328 = vset.pattern.permute.xlu0 5
    %329 = vperm.xlu0 %328, %v51
    %v330 = vpop.permute.xlu0 %329
    %v332 = vsel %vm119, %v46, 0
    %v335 = vsel %vm119, %v47, 0
    %v338 = vsel %vm119, %v48, 0
    %v341 = vsel %vm129, %v320, 0
    %343 = vmatpush.msra.mxu0 0.0
    %344 = vmatpush.msra.mxu0 0.0
    %345 = vmatpush.msra.mxu0 0.0
    %346 = vmatpush.msra.mxu0 0.0
    %347 = vmatpush.msra.mxu0 0.0
    %348 = vmatpush.msra.mxu0 0.0
    %349 = vmatpush.msra.mxu0 0.0
    %350 = vmatpush.msra.mxu0 0.0
    %351 = vmatpush.msra.mxu0 0.0
    %352 = vmatpush.msra.mxu0 0.0
    %353 = vmatpush.msra.mxu0 0.0
    %354 = vmatpush.msra.mxu0 0.0
    %355 = vmatpush.msra.mxu0 0.0
    %356 = vmatpush.msra.mxu0 %v341
    %357 = vmatpush.msra.mxu0 %v319
    %358 = vmatpush.msra.mxu0 %v318
    %359 = vmatmul.f32.gmra.mxu0 %v332
    %v360 = vpop.f32.mrf.mxu0
    %v361 = vadd.f32 %v323, %v360
    %362 = vmatmul.f32.gmra.mxu0 %v335
    %v363 = vpop.f32.mrf.mxu0
    %364 = vmatmul.f32.gmra.mxu0 %v338
    %v365 = vpop.f32.mrf.mxu0
    %366 = vdwg.mxu0
    %367 = vst [vmem:[#allocation5] sm:$0x1] %v361
    // Predicated region
    $region18: #{tpu_custom_call.1} parent=1 // pred_check
      _
    $region19: #{tpu_custom_call.1} parent=1 // pred_check_branch
      %369 = sbr.rel (0) target = $region21
    $region20: #{tpu_custom_call.1} parent=1 // pred_region
      %371 = vsyncadd [#allocation4], 0
      %s373 = sshll.u32 [#allocation5], 4
      %s374 = int_to_ptr.vmem [resolvable:$true] %s373
      %s375 = sshll.u32 %s3, 4
      %s376 = int_to_ptr.hbm [resolvable:$true] %s375
      %378 = dma.vmem_to_hbm [thread:$0]  %s374, 16, %s376, [#allocation4]
    $region21: #{tpu_custom_call.1} parent=1 // pred_fallthru
      _
    // Predicated region
    $region22: #{tpu_custom_call.1} parent=1 // pred_check
      _
    $region23: #{tpu_custom_call.1} parent=1 // pred_check_branch
      %380 = sbr.rel (0) target = $region25
    $region24: #{tpu_custom_call.1} parent=1 // pred_region
      %382 = dma.done [#allocation4], 16
    $region25: #{tpu_custom_call.1} parent=1 // pred_fallthru
      _
    %383 = vsyncpa [#allocation3], 1
    %384 = vsyncpa [#allocation4], 1

</llo_original>
